<compile_context>
chip_gen: v6e
topology: v6e:2x2x1
jax: 0.10.0
libtpu: 0.0.40
codegen_flags: <defaults>
</compile_context>

<pallas_src>
from functools import partial

import jax
import jax.numpy as jnp
from jax.experimental import pallas as pl
from jax.experimental.pallas import tpu as pltpu

H_PAD = 128          # lane-dense hidden width for compute
A_PAD = 128          # lane-dense action width for compute (softmax over 128 lanes)
NEG_INF = -1e30      # bias for padded action columns -> exp() == 0


def _make_policy_kernel(num_actions):
    def policy_kernel(x_ref, w1_ref, b1_ref, w2_ref, b2_ref, out_ref):
        # In-kernel cast of the (tb, S) tile to the weight dtype (no-op on the
        # all-f32 path; cheap VPU work on the bf16 fast path).
        x = x_ref[...].astype(w1_ref.dtype)

        # fc1 + ReLU : (tb, S) @ (S, H_PAD) -> (tb, H_PAD), f32 accumulation.
        h = jnp.dot(x, w1_ref[...], preferred_element_type=jnp.float32)
        h = jnp.maximum(h + b1_ref[...], 0.0)

        # fc2 : (tb, H_PAD) @ (H_PAD, A_PAD) -> (tb, A_PAD).
        logits = jnp.dot(h.astype(w2_ref.dtype), w2_ref[...],
                         preferred_element_type=jnp.float32)
        logits = logits + b2_ref[...]          # padded columns get -1e30 here

        # Numerically-stable softmax over the lane-dense 128-wide action axis.
        # Padded columns: exp(-1e30 - m) == 0, so they do not affect the denom.
        m = jnp.max(logits, axis=-1, keepdims=True)
        e = jnp.exp(logits - m)
        denom = jnp.sum(e, axis=-1, keepdims=True)
        probs = e / denom                      # exact normalization (cheap: denom is (tb,1))

        # Write only the real probability columns (narrow masked store; avoids
        # a 64x padded f32 writeback and the wrapper-side [:, :A] slice).
        out_ref[...] = probs[:, :num_actions].astype(out_ref.dtype)
    return policy_kernel


def _round_up(n, m):
    return ((n + m - 1) // m) * m


def _choose_tb(batch, block_b):
    """Pick the batch tile: single small tile for rollout-sized batches,
    otherwise aim for >= 2 grid steps (v7x has 2 TensorCores), capped at block_b."""
    b8 = _round_up(batch, 8)
    if b8 <= 16:
        return b8
    half = _round_up((b8 + 1) // 2, 8)
    return max(8, min(block_b, half))


def prepare_params(w1, b1, w2, b2, *, use_bf16_mxu=False):
    """Pad/cast the weights ONCE (lane-dense shapes). Zero padding of w1/b1/w2
    keeps the math exact (ReLU(0)=0 contributes nothing); padded b2 columns are
    -1e30 so their softmax weight is exactly 0. Biases stay f32 on all paths."""
    S, H = w1.shape
    H2, A = w2.shape
    assert H == H2, "fc1 out features must match fc2 in features"
    assert H <= H_PAD, f"h_size {H} exceeds H_PAD={H_PAD}"
    assert A <= A_PAD, f"action_size {A} exceeds A_PAD={A_PAD}"
    mxu_dtype = jnp.bfloat16 if use_bf16_mxu else jnp.float32
    w1_p = jnp.zeros((S, H_PAD), mxu_dtype).at[:, :H].set(w1.astype(mxu_dtype))
    b1_p = jnp.zeros((1, H_PAD), jnp.float32).at[:, :H].set(
        b1.reshape(1, H).astype(jnp.float32))
    w2_p = jnp.zeros((H_PAD, A_PAD), mxu_dtype).at[:H, :A].set(w2.astype(mxu_dtype))
    b2_p = jnp.full((1, A_PAD), NEG_INF, jnp.float32).at[:, :A].set(
        b2.reshape(1, A).astype(jnp.float32))
    return (w1_p, b1_p, w2_p, b2_p, int(A))


@partial(jax.jit, static_argnames=("num_actions", "block_b"))
def _policy_forward_padded(x, w1_p, b1_p, w2_p, b2_p, *, num_actions, block_b):
    B, S = x.shape
    tb = _choose_tb(B, block_b)
    grid = (pl.cdiv(B, tb),)
    vmem = pltpu.MemorySpace.VMEM
    return pl.pallas_call(
        _make_policy_kernel(num_actions),
        out_shape=jax.ShapeDtypeStruct((B, num_actions), jnp.float32),
        grid=grid,
        in_specs=[
            pl.BlockSpec((tb, S), lambda i: (i, 0), memory_space=vmem),
            pl.BlockSpec((S, H_PAD), lambda i: (0, 0), memory_space=vmem),
            pl.BlockSpec((1, H_PAD), lambda i: (0, 0), memory_space=vmem),
            pl.BlockSpec((H_PAD, A_PAD), lambda i: (0, 0), memory_space=vmem),
            pl.BlockSpec((1, A_PAD), lambda i: (0, 0), memory_space=vmem),
        ],
        out_specs=pl.BlockSpec((tb, num_actions), lambda i: (i, 0),
                               memory_space=vmem),
        compiler_params=pltpu.CompilerParams(
            dimension_semantics=("parallel",)),   # batch tiles shard across TCs
    )(x, w1_p, b1_p, w2_p, b2_p)


def policy_forward(x, params, *, block_b=1024):
    """x: (B, S) f32; params: output of prepare_params -> (B, A) probabilities."""
    w1_p, b1_p, w2_p, b2_p, num_actions = params
    return _policy_forward_padded(x, w1_p, b1_p, w2_p, b2_p,
                                  num_actions=num_actions, block_b=block_b)


def init_params(key, state_size=4, action_size=2, h_size=24):
    """Deterministic init mimicking nn.Linear's uniform(-1/sqrt(fan_in), 1/sqrt(fan_in))."""
    k1, k2, k3, k4 = jax.random.split(key, 4)
    bound1 = 1.0 / jnp.sqrt(state_size)
    bound2 = 1.0 / jnp.sqrt(h_size)
    # Stored pre-transposed: (in, out)
    w1 = jax.random.uniform(k1, (state_size, h_size), jnp.float32, -bound1, bound1)
    b1 = jax.random.uniform(k2, (1, h_size), jnp.float32, -bound1, bound1)
    w2 = jax.random.uniform(k3, (h_size, action_size), jnp.float32, -bound2, bound2)
    b2 = jax.random.uniform(k4, (1, action_size), jnp.float32, -bound2, bound2)
    return w1, b1, w2, b2


# TODO(synk): get_action's Categorical sampling / gym interaction is host-side
# policy logic, not part of the forward pass, so it is not implemented as a kernel.

if __name__ == "__main__":
    key = jax.random.PRNGKey(0)
    kx, kp, kb = jax.random.split(key, 3)

    # CartPole-v1: state_size=4, action_size=2, h_size=24.
    B, state_size, action_size, h_size = 2, 4, 2, 24
    x = jax.random.normal(kx, (B, state_size), jnp.float32)
    w1, b1, w2, b2 = init_params(kp, state_size, action_size, h_size)

    def reference(xv):
        h = jnp.maximum(xv @ w1 + b1, 0.0)
        return jax.nn.softmax(h @ w2 + b2, axis=1)

    # --- Small-batch (rollout-style) call: f32 path (also the v5e path),
    #     weights padded once, jitted forward, single 8-row tile. ---
    params_f32 = prepare_params(w1, b1, w2, b2, use_bf16_mxu=False)
    probs = jax.block_until_ready(policy_forward(x, params_f32))
    probs_ref = reference(x)
    assert probs.shape == (B, action_size)
    assert jnp.allclose(probs, probs_ref, atol=5e-3), "mismatch vs reference (small batch)"
    assert jnp.allclose(jnp.sum(probs, axis=1), 1.0, atol=1e-4)

    # --- Large-batch call: bf16 MXU fast path (v6e/v7x), weights padded once,
    #     grid has >= 2 steps so both v7x TensorCores get work. ---
    B_big = 512
    x_big = jax.random.normal(kb, (B_big, state_size), jnp.float32)
    params_bf16 = prepare_params(w1, b1, w2, b2, use_bf16_mxu=True)
    probs_big = jax.block_until_ready(
        policy_forward(x_big, params_bf16, block_b=1024))
    probs_big_ref = reference(x_big)
    assert probs_big.shape == (B_big, action_size)
    assert jnp.allclose(probs_big, probs_big_ref, atol=3e-2), "mismatch vs reference (big batch)"
    assert jnp.allclose(jnp.sum(probs_big, axis=1), 1.0, atol=1e-3)

    print("KERNEL_OK")
</pallas_src>

<mosaic_0001>
module attributes {stable_mosaic.version = 11 : i64} {
  func.func @policy_kernel(%arg0: i32, %arg1: memref<8x4xf32, #tpu.memory_space<vmem>>, %arg2: memref<4x128xf32, #tpu.memory_space<vmem>>, %arg3: memref<1x128xf32, #tpu.memory_space<vmem>>, %arg4: memref<128x128xf32, #tpu.memory_space<vmem>>, %arg5: memref<1x128xf32, #tpu.memory_space<vmem>>, %arg6: memref<8x2xf32, #tpu.memory_space<vmem>>) attributes {dimension_semantics = [#tpu.dimension_semantics<parallel>], iteration_bounds = array<i64: 1>, scalar_prefetch = 0 : i64, scratch_operands = 0 : i64, tpu.core_type = #tpu.core_type<tc>, window_params = [{transform_indices = @transform_0, window_bounds = array<i64: 8, 4>}, {pipeline_mode = #tpu.pipeline_mode<synchronous>, transform_indices = @transform_1, window_bounds = array<i64: 4, 128>}, {pipeline_mode = #tpu.pipeline_mode<synchronous>, transform_indices = @transform_2, window_bounds = array<i64: 1, 128>}, {pipeline_mode = #tpu.pipeline_mode<synchronous>, transform_indices = @transform_3, window_bounds = array<i64: 128, 128>}, {pipeline_mode = #tpu.pipeline_mode<synchronous>, transform_indices = @transform_4, window_bounds = array<i64: 1, 128>}, {transform_indices = @transform_5, window_bounds = array<i64: 8, 2>}]} {
    %c0 = arith.constant 0 : index
    %c0_0 = arith.constant 0 : index
    %0 = vector.load %arg1[%c0, %c0_0] : memref<8x4xf32, #tpu.memory_space<vmem>>, vector<8x4xf32>
    %c0_1 = arith.constant 0 : index
    %c0_2 = arith.constant 0 : index
    %1 = vector.load %arg2[%c0_1, %c0_2] : memref<4x128xf32, #tpu.memory_space<vmem>>, vector<4x128xf32>
    %cst = arith.constant dense<0.000000e+00> : vector<8x128xf32>
    %2 = tpu.matmul %0, %1, %cst {dimension_numbers = #tpu.dot_dimension_numbers<[1], [0], [0], [1], [0, 0, 1, 1], [], []>} : vector<8x4xf32>, vector<4x128xf32>, vector<8x128xf32> -> vector<8x128xf32>
    %c0_3 = arith.constant 0 : index
    %c0_4 = arith.constant 0 : index
    %3 = vector.load %arg3[%c0_3, %c0_4] : memref<1x128xf32, #tpu.memory_space<vmem>>, vector<1x128xf32>
    %4 = vector.broadcast %3 : vector<1x128xf32> to vector<8x128xf32>
    %5 = arith.addf %2, %4 : vector<8x128xf32>
    %cst_5 = arith.constant 0.000000e+00 : f32
    %6 = vector.broadcast %cst_5 : f32 to vector<8x128xf32>
    %7 = arith.maximumf %5, %6 : vector<8x128xf32>
    %c0_6 = arith.constant 0 : index
    %c0_7 = arith.constant 0 : index
    %8 = vector.load %arg4[%c0_6, %c0_7] : memref<128x128xf32, #tpu.memory_space<vmem>>, vector<128x128xf32>
    %cst_8 = arith.constant dense<0.000000e+00> : vector<8x128xf32>
    %9 = tpu.matmul %7, %8, %cst_8 {dimension_numbers = #tpu.dot_dimension_numbers<[1], [0], [0], [1], [0, 0, 1, 1], [], []>} : vector<8x128xf32>, vector<128x128xf32>, vector<8x128xf32> -> vector<8x128xf32>
    %c0_9 = arith.constant 0 : index
    %c0_10 = arith.constant 0 : index
    %10 = vector.load %arg5[%c0_9, %c0_10] : memref<1x128xf32, #tpu.memory_space<vmem>>, vector<1x128xf32>
    %11 = vector.broadcast %10 : vector<1x128xf32> to vector<8x128xf32>
    %12 = arith.addf %9, %11 : vector<8x128xf32>
    %cst_11 = arith.constant dense<0xFF800000> : vector<8xf32>
    %13 = vector.multi_reduction <maximumf>, %12, %cst_11 [1] : vector<8x128xf32> to vector<8xf32>
    %14 = vector.shape_cast %13 : vector<8xf32> to vector<8x1xf32>
    %15 = vector.broadcast %14 : vector<8x1xf32> to vector<8x128xf32>
    %16 = arith.subf %12, %15 : vector<8x128xf32>
    %17 = math.exp %16 : vector<8x128xf32>
    %cst_12 = arith.constant dense<0.000000e+00> : vector<8xf32>
    %18 = vector.multi_reduction <add>, %17, %cst_12 [1] : vector<8x128xf32> to vector<8xf32>
    %19 = vector.shape_cast %18 : vector<8xf32> to vector<8x1xf32>
    %20 = vector.broadcast %19 : vector<8x1xf32> to vector<8x128xf32>
    %21 = arith.divf %17, %20 : vector<8x128xf32>
    %22 = vector.extract_strided_slice %21 {offsets = [0, 0], sizes = [8, 2], strides = [1, 1]} : vector<8x128xf32> to vector<8x2xf32>
    %c0_13 = arith.constant 0 : index
    %c0_14 = arith.constant 0 : index
    %23 = vector.load %arg6[%c0_13, %c0_14] : memref<8x2xf32, #tpu.memory_space<vmem>>, vector<8x2xf32>
    tpu.vector_store %arg6[%c0_13, %c0_14], %22 {strides = array<i32>} : memref<8x2xf32, #tpu.memory_space<vmem>>, vector<8x2xf32>,
    return
  }
  func.func @transform_0(%arg0: i32) -> (i32, i32) {
    %c0_i32 = arith.constant 0 : i32
    %c0_i32_0 = arith.constant 0 : i32
    return %arg0, %c0_i32 : i32, i32
  }
  func.func @transform_1(%arg0: i32) -> (i32, i32) {
    %c0_i32 = arith.constant 0 : i32
    %c0_i32_0 = arith.constant 0 : i32
    %c0_i32_1 = arith.constant 0 : i32
    return %c0_i32, %c0_i32_0 : i32, i32
  }
  func.func @transform_2(%arg0: i32) -> (i32, i32) {
    %c0_i32 = arith.constant 0 : i32
    %c0_i32_0 = arith.constant 0 : i32
    %c0_i32_1 = arith.constant 0 : i32
    return %c0_i32, %c0_i32_0 : i32, i32
  }
  func.func @transform_3(%arg0: i32) -> (i32, i32) {
    %c0_i32 = arith.constant 0 : i32
    %c0_i32_0 = arith.constant 0 : i32
    %c0_i32_1 = arith.constant 0 : i32
    return %c0_i32, %c0_i32_0 : i32, i32
  }
  func.func @transform_4(%arg0: i32) -> (i32, i32) {
    %c0_i32 = arith.constant 0 : i32
    %c0_i32_0 = arith.constant 0 : i32
    %c0_i32_1 = arith.constant 0 : i32
    return %c0_i32, %c0_i32_0 : i32, i32
  }
  func.func @transform_5(%arg0: i32) -> (i32, i32) {
    %c0_i32 = arith.constant 0 : i32
    %c0_i32_0 = arith.constant 0 : i32
    return %arg0, %c0_i32 : i32, i32
  }
}

</mosaic_0001>

<llo_original>
// kernel: _policy_forward_padded.1
$region0: #{_policy_forward_padded.1}
  #allocation0 [shape = 'u32[]', space=smem, size = 0x4, offset = 0x4, fixed_abs, tag = 'smem constant byte address 0x4 - core index']
  #allocation1 [shape = 'u32[144,128]{1,0:T(1,128)}', space=vmem, size = 0x12000, scoped, tag = 'internal scratch']
  %s0 = inlined_call_operand.hbm [shape: f32[2,4], index: 0, kind: input, shape index: {}]
  %s1 = inlined_call_operand.hbm [shape: f32[4,128], index: 1, kind: input, shape index: {}]
  %s2 = inlined_call_operand.vmem [shape: f32[1,128], index: 2, kind: input, shape index: {}]
  %s3 = inlined_call_operand.hbm [shape: f32[128,128], index: 3, kind: input, shape index: {}]
  %s4 = inlined_call_operand.vmem [shape: f32[1,128], index: 4, kind: input, shape index: {}]
  %s5 = inlined_call_operand.hbm [shape: f32[2,2], index: 5, kind: output, shape index: {}]
  %s6 = sld [smem:[#allocation0]]
  $region42: #{_policy_forward_padded.1} parent=0
    _
  %s8 = ssub.s32 1, %s6
  %s9 = scalar_select 0, %s8, %s6
  $region1: #{_policy_forward_padded.1} parent=0
    #allocation2 [shape = 'u8[4096]{0}', space=vmem, size = 0x1000, scoped, tag = 'input window, operand 0, single buffered']
    #allocation3 [shape = 's32[1]{0}', space=sflag, size = 0x4, scoped, tag = 'scoped memory for _policy_forward_padded.1']
    #allocation4 [shape = 's32[1]{0}', space=sflag, size = 0x4, scoped, tag = 'scoped memory for _policy_forward_padded.1']
    #allocation5 [shape = 'u8[2048]{0}', space=vmem, size = 0x800, scoped, tag = 'input window, operand 1, single buffered']
    #allocation6 [shape = 's32[1]{0}', space=sflag, size = 0x4, scoped, tag = 'scoped memory for _policy_forward_padded.1']
    #allocation7 [shape = 'u8[65536]{0}', space=vmem, size = 0x10000, scoped, tag = 'input window, operand 3, single buffered']
    #allocation8 [shape = 'u8[4096]{0}', space=vmem, size = 0x1000, scoped, tag = 'output window, operand 0, single buffered']
    %10 = vsyncpa [#allocation3], 0
    %11 = vsyncpa [#allocation6], 0
    %12 = vsyncpa [#allocation4], 0
    // Predicated region
    $region2: #{_policy_forward_padded.1} parent=1 // pred_check
      _
    $region3: #{_policy_forward_padded.1} parent=1 // pred_check_branch
      %14 = sbr.rel (0) target = $region5
    $region4: #{_policy_forward_padded.1} parent=1 // pred_region
      %s16 = ssub.s32 128, 32
      %17 = vsyncadd [#allocation3], %s16
      %s18 = sshll.u32 [#allocation2], 4
      %s19 = int_to_ptr.vmem [resolvable:$true] %s18
      %24 = dma.hbm_to_vmem [thread:$0]  %s0, 32, %s19, [#allocation3], 32, 32, 2
    $region5: #{_policy_forward_padded.1} parent=1 // pred_fallthru
      _
    // Predicated region
    $region6: #{_policy_forward_padded.1} parent=1 // pred_check
      _
    $region7: #{_policy_forward_padded.1} parent=1 // pred_check_branch
      %26 = sbr.rel (0) target = $region9
    $region8: #{_policy_forward_padded.1} parent=1 // pred_region
      %s28 = ssub.s32 64, 64
      %29 = vsyncadd [#allocation6], %s28
      %s31 = sshll.u32 [#allocation5], 4
      %s32 = int_to_ptr.vmem [resolvable:$true] %s31
      %34 = dma.hbm_to_vmem [thread:$0]  %s1, 64, %s32, [#allocation6]
    $region9: #{_policy_forward_padded.1} parent=1 // pred_fallthru
      _
    // Predicated region
    $region10: #{_policy_forward_padded.1} parent=1 // pred_check
      _
    $region11: #{_policy_forward_padded.1} parent=1 // pred_check_branch
      %36 = sbr.rel (0) target = $region13
    $region12: #{_policy_forward_padded.1} parent=1 // pred_region
      _
    $region13: #{_policy_forward_padded.1} parent=1 // pred_fallthru
      _
    // Predicated region
    $region14: #{_policy_forward_padded.1} parent=1 // pred_check
      _
    $region15: #{_policy_forward_padded.1} parent=1 // pred_check_branch
      %38 = sbr.rel (0) target = $region17
    $region16: #{_policy_forward_padded.1} parent=1 // pred_region
      %s40 = ssub.s32 2048, 2048
      %41 = vsyncadd [#allocation6], %s40
      %s42 = sshll.u32 [#allocation7], 4
      %s43 = int_to_ptr.vmem [resolvable:$true] %s42
      %48 = dma.hbm_to_vmem [thread:$0]  %s3, 2048, %s43, [#allocation6], 128, 128, 8
    $region17: #{_policy_forward_padded.1} parent=1 // pred_fallthru
      _
    // Predicated region
    $region18: #{_policy_forward_padded.1} parent=1 // pred_check
      _
    $region19: #{_policy_forward_padded.1} parent=1 // pred_check_branch
      %50 = sbr.rel (0) target = $region21
    $region20: #{_policy_forward_padded.1} parent=1 // pred_region
      _
    $region21: #{_policy_forward_padded.1} parent=1 // pred_fallthru
      _
    // Predicated region
    $region22: #{_policy_forward_padded.1} parent=1 // pred_check
      _
    $region23: #{_policy_forward_padded.1} parent=1 // pred_check_branch
      %52 = sbr.rel (0) target = $region25
    $region24: #{_policy_forward_padded.1} parent=1 // pred_region
      %53 = dma.done [#allocation3], 128
    $region25: #{_policy_forward_padded.1} parent=1 // pred_fallthru
      _
    // Predicated region
    $region26: #{_policy_forward_padded.1} parent=1 // pred_check
      _
    $region27: #{_policy_forward_padded.1} parent=1 // pred_check_branch
      %55 = sbr.rel (0) target = $region29
    $region28: #{_policy_forward_padded.1} parent=1 // pred_region
      %56 = dma.done [#allocation6], 64
    $region29: #{_policy_forward_padded.1} parent=1 // pred_fallthru
      _
    // Predicated region
    $region30: #{_policy_forward_padded.1} parent=1 // pred_check
      _
    $region31: #{_policy_forward_padded.1} parent=1 // pred_check_branch
      %58 = sbr.rel (0) target = $region33
    $region32: #{_policy_forward_padded.1} parent=1 // pred_region
      %59 = dma.done [#allocation6], 2048
    $region33: #{_policy_forward_padded.1} parent=1 // pred_fallthru
      _
    %v60 = vld [vmem:[#allocation2] sm:$0xff]
    %v61 = vld [vmem:[#allocation5] sm:$0xf]
    %v62 = vld [vmem:[%s2] sm:$0x1]
    %v64 = vlaneseq
    %v65 = vshrl.u32 %v64, 7
    %v66 = vsub.s32 0, %v65
    %v67 = vrot.slane %v62, %v66
    %vm69 = vcmask 31744
    %v71 = vsel %vm69, %v60, 0
    %vm73 = vcmask 1043456
    %v75 = vsel %vm73, %v61, 0
    %77 = vmatprep.subr.mxu0 0.0
    %78 = vmatpush1.msra.mxu0 0.0
    %79 = vmatprep.subr.mxu0 0.0
    %80 = vmatpush1.msra.mxu0 0.0
    %81 = vmatprep.subr.mxu0 0.0
    %82 = vmatpush1.msra.mxu0 0.0
    %83 = vmatprep.subr.mxu0 0.0
    %84 = vmatpush1.msra.mxu0 0.0
    %85 = vmatprep.subr.mxu0 0.0
    %86 = vmatpush1.msra.mxu0 0.0
    %87 = vmatprep.subr.mxu0 0.0
    %88 = vmatpush1.msra.mxu0 0.0
    %89 = vmatprep.subr.mxu0 0.0
    %90 = vmatpush1.msra.mxu0 0.0
    %91 = vmatprep.subr.mxu0 0.0
    %92 = vmatpush1.msra.mxu0 0.0
    %93 = vmatprep.subr.mxu0 0.0
    %94 = vmatpush1.msra.mxu0 0.0
    %95 = vmatprep.subr.mxu0 0.0
    %96 = vmatpush1.msra.mxu0 0.0
    %97 = vmatprep.subr.mxu0 0.0
    %98 = vmatpush1.msra.mxu0 0.0
    %99 = vmatprep.subr.mxu0 0.0
    %100 = vmatpush1.msra.mxu0 0.0
    %101 = vmatprep.subr.mxu0 0.0
    %102 = vmatpush1.msra.mxu0 0.0
    %103 = vmatprep.subr.mxu0 0.0
    %104 = vmatpush1.msra.mxu0 0.0
    %105 = vmatprep.subr.mxu0 0.0
    %106 = vmatpush1.msra.mxu0 0.0
    %107 = vmatprep.subr.mxu0 0.0
    %108 = vmatpush1.msra.mxu0 %v75
    %109 = vmatprep.subr.mxu0 0.0
    %110 = vmatpush2.msra.mxu0 0.0
    %111 = vmatprep.subr.mxu0 0.0
    %112 = vmatpush2.msra.mxu0 0.0
    %113 = vmatprep.subr.mxu0 0.0
    %114 = vmatpush2.msra.mxu0 0.0
    %115 = vmatprep.subr.mxu0 0.0
    %116 = vmatpush2.msra.mxu0 0.0
    %117 = vmatprep.subr.mxu0 0.0
    %118 = vmatpush2.msra.mxu0 0.0
    %119 = vmatprep.subr.mxu0 0.0
    %120 = vmatpush2.msra.mxu0 0.0
    %121 = vmatprep.subr.mxu0 0.0
    %122 = vmatpush2.msra.mxu0 0.0
    %123 = vmatprep.subr.mxu0 0.0
    %124 = vmatpush2.msra.mxu0 0.0
    %125 = vmatprep.subr.mxu0 0.0
    %126 = vmatpush2.msra.mxu0 0.0
    %127 = vmatprep.subr.mxu0 0.0
    %128 = vmatpush2.msra.mxu0 0.0
    %129 = vmatprep.subr.mxu0 0.0
    %130 = vmatpush2.msra.mxu0 0.0
    %131 = vmatprep.subr.mxu0 0.0
    %132 = vmatpush2.msra.mxu0 0.0
    %133 = vmatprep.subr.mxu0 0.0
    %134 = vmatpush2.msra.mxu0 0.0
    %135 = vmatprep.subr.mxu0 0.0
    %136 = vmatpush2.msra.mxu0 0.0
    %137 = vmatprep.subr.mxu0 0.0
    %138 = vmatpush2.msra.mxu0 0.0
    %139 = vmatprep.subr.mxu0 0.0
    %140 = vmatpush2.msra.mxu0 0.0
    %141 = vmatprep.mubr.f32.mxu0 0.0
    %142 = vmatmul.mubr.f32.gmra.mxu0 %v71
    %v143 = vpop.f32.mrf.mxu0
    %v144 = vadd.f32 %v67, %v143
    %v145 = vpop.f32.mrf.mxu0
    %146 = vdwg.mxu0
    %v147 = vmax.f32 %v144, 0.0
    %v148 = vld [vmem:[#allocation7] sm:$0xff]
    %v149 = vld [vmem:[#allocation7 + $0x8] sm:$0xff]
    %v150 = vld [vmem:[#allocation7 + $0x10] sm:$0xff]
    %v151 = vld [vmem:[#allocation7 + $0x18] sm:$0xff]
    %v152 = vld [vmem:[#allocation7 + $0x20] sm:$0xff]
    %v153 = vld [vmem:[#allocation7 + $0x28] sm:$0xff]
    %v154 = vld [vmem:[#allocation7 + $0x30] sm:$0xff]
    %v155 = vld [vmem:[#allocation7 + $0x38] sm:$0xff]
    %v156 = vld [vmem:[#allocation7 + $0x40] sm:$0xff]
    %v157 = vld [vmem:[#allocation7 + $0x48] sm:$0xff]
    %v158 = vld [vmem:[#allocation7 + $0x50] sm:$0xff]
    %v159 = vld [vmem:[#allocation7 + $0x58] sm:$0xff]
    %v160 = vld [vmem:[#allocation7 + $0x60] sm:$0xff]
    %v161 = vld [vmem:[#allocation7 + $0x68] sm:$0xff]
    %v162 = vld [vmem:[#allocation7 + $0x70] sm:$0xff]
    %v163 = vld [vmem:[#allocation7 + $0x78] sm:$0xff]
    %v164 = vld [vmem:[%s4] sm:$0x1]
    %v166 = vlaneseq
    %v167 = vshrl.u32 %v166, 7
    %v168 = vsub.s32 0, %v167
    %v169 = vrot.slane %v164, %v168
    %171 = vmatprep.subr.mxu0 0.0
    %172 = vmatpush1.msra.mxu0 %v163
    %173 = vmatprep.subr.mxu0 0.0
    %174 = vmatpush1.msra.mxu0 %v162
    %175 = vmatprep.subr.mxu0 0.0
    %176 = vmatpush1.msra.mxu0 %v161
    %177 = vmatprep.subr.mxu0 0.0
    %178 = vmatpush1.msra.mxu0 %v160
    %179 = vmatprep.subr.mxu0 0.0
    %180 = vmatpush1.msra.mxu0 %v159
    %181 = vmatprep.subr.mxu0 0.0
    %182 = vmatpush1.msra.mxu0 %v158
    %183 = vmatprep.subr.mxu0 0.0
    %184 = vmatpush1.msra.mxu0 %v157
    %185 = vmatprep.subr.mxu0 0.0
    %186 = vmatpush1.msra.mxu0 %v156
    %187 = vmatprep.subr.mxu0 0.0
    %188 = vmatpush1.msra.mxu0 %v155
    %189 = vmatprep.subr.mxu0 0.0
    %190 = vmatpush1.msra.mxu0 %v154
    %191 = vmatprep.subr.mxu0 0.0
    %192 = vmatpush1.msra.mxu0 %v153
    %193 = vmatprep.subr.mxu0 0.0
    %194 = vmatpush1.msra.mxu0 %v152
    %195 = vmatprep.subr.mxu0 0.0
    %196 = vmatpush1.msra.mxu0 %v151
    %197 = vmatprep.subr.mxu0 0.0
    %198 = vmatpush1.msra.mxu0 %v150
    %199 = vmatprep.subr.mxu0 0.0
    %200 = vmatpush1.msra.mxu0 %v149
    %201 = vmatprep.subr.mxu0 0.0
    %202 = vmatpush1.msra.mxu0 %v148
    %203 = vmatprep.subr.mxu0 0.0
    %204 = vmatpush2.msra.mxu0 0.0
    %205 = vmatprep.subr.mxu0 0.0
    %206 = vmatpush2.msra.mxu0 0.0
    %207 = vmatprep.subr.mxu0 0.0
    %208 = vmatpush2.msra.mxu0 0.0
    %209 = vmatprep.subr.mxu0 0.0
    %210 = vmatpush2.msra.mxu0 0.0
    %211 = vmatprep.subr.mxu0 0.0
    %212 = vmatpush2.msra.mxu0 0.0
    %213 = vmatprep.subr.mxu0 0.0
    %214 = vmatpush2.msra.mxu0 0.0
    %215 = vmatprep.subr.mxu0 0.0
    %216 = vmatpush2.msra.mxu0 0.0
    %217 = vmatprep.subr.mxu0 0.0
    %218 = vmatpush2.msra.mxu0 0.0
    %219 = vmatprep.subr.mxu0 0.0
    %220 = vmatpush2.msra.mxu0 0.0
    %221 = vmatprep.subr.mxu0 0.0
    %222 = vmatpush2.msra.mxu0 0.0
    %223 = vmatprep.subr.mxu0 0.0
    %224 = vmatpush2.msra.mxu0 0.0
    %225 = vmatprep.subr.mxu0 0.0
    %226 = vmatpush2.msra.mxu0 0.0
    %227 = vmatprep.subr.mxu0 0.0
    %228 = vmatpush2.msra.mxu0 0.0
    %229 = vmatprep.subr.mxu0 0.0
    %230 = vmatpush2.msra.mxu0 0.0
    %231 = vmatprep.subr.mxu0 0.0
    %232 = vmatpush2.msra.mxu0 0.0
    %233 = vmatprep.subr.mxu0 0.0
    %234 = vmatpush2.msra.mxu0 0.0
    %235 = vmatprep.mubr.f32.mxu0 0.0
    %236 = vmatmul.mubr.f32.gmra.mxu0 %v147
    %v237 = vpop.f32.mrf.mxu0
    %v238 = vadd.f32 %v169, %v237
    %v239 = vpop.f32.mrf.mxu0
    %240 = vdwg.mxu0
    %241 = vmax.xlane.f32.xlu0 %v238
    %v242 = vpop.xlane.xlu0 %241
    %v243 = vsub.f32 %v238, %v242
    %v244 = vmul.f32 %v243, 1.442695
    %v245 = vpow.pop %v244
    %246 = vadd.xlane.f32.xlu0 %v245
    %v247 = vpop.xlane.xlu0 %246
    %v248 = vrcp.pop %v247
    %v249 = vmul.f32 %v245, %v248
    %vm250 = vcmask 15360
    %251 = vst.msk [vmem:[#allocation8] sm:$0xff] %vm250, %v249
    // Predicated region
    $region34: #{_policy_forward_padded.1} parent=1 // pred_check
      _
    $region35: #{_policy_forward_padded.1} parent=1 // pred_check_branch
      %253 = sbr.rel (0) target = $region37
    $region36: #{_policy_forward_padded.1} parent=1 // pred_region
      %s255 = ssub.s32 128, 32
      %256 = vsyncadd [#allocation4], %s255
      %s257 = sshll.u32 [#allocation8], 4
      %s258 = int_to_ptr.vmem [resolvable:$true] %s257
      %263 = dma.vmem_to_hbm [thread:$0]  %s258, 32, %s5, [#allocation4], 32, 32, 2
    $region37: #{_policy_forward_padded.1} parent=1 // pred_fallthru
      _
    // Predicated region
    $region38: #{_policy_forward_padded.1} parent=1 // pred_check
      _
    $region39: #{_policy_forward_padded.1} parent=1 // pred_check_branch
      %265 = sbr.rel (0) target = $region41
    $region40: #{_policy_forward_padded.1} parent=1 // pred_region
      %266 = dma.done [#allocation4], 128
    $region41: #{_policy_forward_padded.1} parent=1 // pred_fallthru
      _
    %267 = vsyncpa [#allocation3], 1
    %268 = vsyncpa [#allocation6], 1
    %269 = vsyncpa [#allocation4], 1

</llo_original>
